<compile_context>
chip_gen: v7x
topology: tpu7x:2x2x1
jax: 0.10.0
libtpu: 0.0.40
codegen_flags: <defaults>
</compile_context>

<pallas_src>
import functools

import jax
import jax.numpy as jnp
from jax.experimental import pallas as pl
from jax.experimental.pallas import tpu as pltpu


def _silu(v):
    return v * jax.nn.sigmoid(v)


# ---------------------------------------------------------------------------
# Shared gate MLP (operates on values, not refs; shapes are tiny: (B, mid)).
# ---------------------------------------------------------------------------
def _gate_mlp(y, w1, b1, w2, b2, wf, s, bbil, w3a, w3b, b3):
    """fc -> SiLU -> fc -> [Bilinear concat] -> SiLU -> fc -> sigmoid (f32)."""
    mo = s.shape[-1]
    # fc[0..1]: Linear(oup -> mid) + SiLU
    h1 = _silu(jnp.dot(y, w1, preferred_element_type=jnp.float32) + b1)
    # fc[2]: Linear(mid -> mid)
    h2 = jnp.dot(h1, w2, preferred_element_type=jnp.float32) + b2

    # Bilinear (densified TRL) branch: one MXU matmul + lane tile + reduce matmul.
    t = jnp.dot(h2, wf, preferred_element_type=jnp.float32)   # (B, mo*mid)
    xh = jnp.tile(h2, (1, mo))                                # xh[b, o*mid+j] = h2[b, j]
    bil = jnp.dot(t * xh, s, preferred_element_type=jnp.float32) + bbil

    # Concater + SiLU + fc[5]: concat([h2, bil]) then Linear == sum of the two
    # split-weight matmuls (avoids an in-kernel concatenate).
    logits = (jnp.dot(_silu(h2), w3a, preferred_element_type=jnp.float32)
              + jnp.dot(_silu(bil), w3b, preferred_element_type=jnp.float32)
              + b3)
    return jax.nn.sigmoid(logits)


# ---------------------------------------------------------------------------
# Fused single-pass kernel: x VMEM-resident, read once / write once.
# ---------------------------------------------------------------------------
def fused_se_kernel(x_ref, w1_ref, b1_ref, w2_ref, b2_ref, wf_ref, s_ref,
                    bbil_ref, w3a_ref, w3b_ref, b3_ref, out_ref, *, inv_l):
    x = x_ref[...]
    # Squeeze: AdaptiveAvgPool1d(1) == mean over L, accumulated in f32.
    y = jnp.sum(x, axis=-1, dtype=jnp.float32) * inv_l
    gate = _gate_mlp(y, w1_ref[...], b1_ref[...], w2_ref[...], b2_ref[...],
                     wf_ref[...], s_ref[...], bbil_ref[...],
                     w3a_ref[...], w3b_ref[...], b3_ref[...])
    out_ref[...] = x * gate.astype(out_ref.dtype)[:, :, None]


# ---------------------------------------------------------------------------
# Pass 1 (two-pass path): tiled reduction over L + gate MLP at the final tile.
# ---------------------------------------------------------------------------
def reduce_gate_kernel(x_ref, w1_ref, b1_ref, w2_ref, b2_ref, wf_ref, s_ref,
                       bbil_ref, w3a_ref, w3b_ref, b3_ref,
                       gate_ref, acc_ref, *, inv_l):
    l = pl.program_id(1)

    @pl.when(l == 0)
    def _():
        acc_ref[...] = jnp.zeros_like(acc_ref)

    # f32-accumulated partial sum of this L tile.
    # TODO(synk): if bf16 inputs ever expose this XLU reduce, accumulate
    # (tb, C, 128) lane chunks on the VPU and reduce once in the final block.
    acc_ref[...] += jnp.sum(x_ref[...], axis=-1, dtype=jnp.float32)

    @pl.when(l == pl.num_programs(1) - 1)
    def _():
        y = acc_ref[...] * inv_l                              # (tb, C) mean
        gate = _gate_mlp(y, w1_ref[...], b1_ref[...], w2_ref[...], b2_ref[...],
                         wf_ref[...], s_ref[...], bbil_ref[...],
                         w3a_ref[...], w3b_ref[...], b3_ref[...])
        # Written already in x.dtype so pass 2 does no per-step casts.
        gate_ref[...] = gate.astype(gate_ref.dtype)


# ---------------------------------------------------------------------------
# Pass 2 (two-pass path): pipelined, HBM-bound x * gate apply.
# ---------------------------------------------------------------------------
def apply_gate_kernel(x_ref, gate_ref, out_ref):
    # TODO(synk): store the gate lane-replicated as (B, C, 128) if the per-step
    # lane broadcast ever becomes visible for bf16 inputs on v7x.
    out_ref[...] = x_ref[...] * gate_ref[...][:, :, None]


# ---------------------------------------------------------------------------
# Generation-aware budgets and tile selection.
# ---------------------------------------------------------------------------
def _vmem_config():
    """VMEM budgets aware of the TPU generation (v5e/v6e: 128 MiB, v7x: 64 MiB)."""
    try:
        cap = int(pltpu.get_tpu_info().vmem_capacity_bytes)
    except Exception:
        cap = 64 * 1024 * 1024                      # conservative (v7x) fallback
    block_budget = max(1 << 20, min(4 << 20, cap // 16))   # ~1-4 MiB per block
    vmem_limit = int(min(cap // 2, 8 * block_budget))      # 32 MiB on all gens
    fused_threshold = int(min(6 << 20, cap // 12))         # fused path if x fits
    return block_budget, vmem_limit, fused_threshold


def _pick_l_tile(B, C, L, itemsize, block_budget):
    """Largest lane-aligned (multiple of 128) L tile dividing L whose
    (B, C, tl) block fits `block_budget` bytes.  Never falls back to the full
    L for lane-tileable inputs; if even a 128-lane tile exceeds the budget we
    still use 128 (minimum aligned tile).
    TODO(synk): extremely large B*C (tl=128 block > budget) would need B/C
    tiling of both passes; not needed for SE-layer sized channel counts."""
    if L % 128 != 0:
        return L                      # ragged / tiny L: single full-extent block
    row_bytes = B * C * itemsize
    max_tl = (block_budget // row_bytes) // 128 * 128
    if max_tl < 128:
        return 128
    best, t, cap = 128, 128, min(max_tl, L)
    while t <= cap:
        if L % t == 0:
            best = t
        t += 128
    return best


# ---------------------------------------------------------------------------
# Wrapper.
# ---------------------------------------------------------------------------
def se_layer(x, params, *, force_two_pass=False):
    w1, b1, w2, b2, wf, s_mat, bbil, w3a, w3b, b3 = params
    weights = (w1, b1, w2, b2, wf, s_mat, bbil, w3a, w3b, b3)
    B, C, L = x.shape
    block_budget, vmem_limit, fused_threshold = _vmem_config()
    x_bytes = B * C * L * x.dtype.itemsize

    # ---- fused single-pass path: x stays VMEM-resident, HBM traffic 2x|x| ----
    if x_bytes <= fused_threshold and not force_two_pass:
        return pl.pallas_call(
            functools.partial(fused_se_kernel, inv_l=1.0 / L),
            out_shape=jax.ShapeDtypeStruct(x.shape, x.dtype),
            compiler_params=pltpu.CompilerParams(vmem_limit_bytes=vmem_limit),
        )(x, *weights)

    # ---- two-pass path (large x) ----
    tl = _pick_l_tile(B, C, L, x.dtype.itemsize, block_budget)
    n_l = L // tl
    # v7x: shard pass 1 over both TensorCores via a parallel B axis whenever the
    # half-batch block still satisfies the (8, 128) sublane constraint.
    tb = B // 2 if (B % 16 == 0) else B
    nb = B // tb

    weight_specs = [pl.BlockSpec(w.shape, lambda b, l: (0, 0)) for w in weights]

    # pass 1: reduce over L tiles, compute the gate at the last step.
    gate = pl.pallas_call(
        functools.partial(reduce_gate_kernel, inv_l=1.0 / L),
        out_shape=jax.ShapeDtypeStruct((B, C), x.dtype),
        grid=(nb, n_l),
        in_specs=[pl.BlockSpec((tb, C, tl), lambda b, l: (b, 0, l))] + weight_specs,
        out_specs=pl.BlockSpec((tb, C), lambda b, l: (b, 0)),
        scratch_shapes=[pltpu.VMEM((tb, C), jnp.float32)],
        compiler_params=pltpu.CompilerParams(
            dimension_semantics=("parallel", "arbitrary"),
            vmem_limit_bytes=vmem_limit),
    )(x, *weights)

    # pass 2: tiled excite (x * gate), parallel axis for megacore sharding.
    return pl.pallas_call(
        apply_gate_kernel,
        out_shape=jax.ShapeDtypeStruct(x.shape, x.dtype),
        grid=(n_l,),
        in_specs=[pl.BlockSpec((B, C, tl), lambda l: (0, 0, l)),
                  pl.BlockSpec((B, C), lambda l: (0, 0))],
        out_specs=pl.BlockSpec((B, C, tl), lambda l: (0, 0, l)),
        compiler_params=pltpu.CompilerParams(
            dimension_semantics=("parallel",),
            vmem_limit_bytes=vmem_limit),
    )(x, gate)


# ---------------------------------------------------------------------------
# Synthetic parameters (matching SELayer.__init__ shapes) + pure-JAX reference.
# ---------------------------------------------------------------------------
def init_params(key, inp, oup, reduction=4):
    mid = int(inp // reduction)
    mo = int(inp // reduction // 2)
    ks = jax.random.split(key, 8)

    def linear(kw, kb, fan_in, fan_out):
        bound = 1.0 / jnp.sqrt(fan_in)
        w = jax.random.uniform(kw, (fan_in, fan_out), jnp.float32, -bound, bound)
        b = jax.random.uniform(kb, (1, fan_out), jnp.float32, -bound, bound)
        return w, b

    w1, b1 = linear(ks[0], ks[1], oup, mid)                   # Linear(oup, mid)
    w2, b2 = linear(ks[2], ks[3], mid, mid)                   # Linear(mid, mid)
    # Dense-equivalent TRL weight (mid, mid, mo), init normal(std=0.00075), bias=True.
    wbil = 0.00075 * jax.random.normal(ks[4], (mid, mid, mo), jnp.float32)
    bbil = jnp.zeros((1, mo), jnp.float32)
    w3, b3 = linear(ks[5], ks[6], mid + mo, oup)              # Linear(mid+mo, oup)
    w3a, w3b = w3[:mid], w3[mid:]

    # Host-side packing for the bilinear branch (flat index k = o*mid + j):
    #   Wf[i, o*mid + j] = W[i, j, o];  S[o*mid + j, o'] = 1{o == o'}.
    wf = jnp.transpose(wbil, (0, 2, 1)).reshape(mid, mo * mid)
    s_mat = jnp.repeat(jnp.eye(mo, dtype=jnp.float32), mid, axis=0)

    kernel_params = (w1, b1, w2, b2, wf, s_mat, bbil, w3a, w3b, b3)
    ref_params = (w1, b1, w2, b2, wbil, bbil, w3, b3)
    return kernel_params, ref_params


def se_layer_ref(x, ref_params):
    w1, b1, w2, b2, wbil, bbil, w3, b3 = ref_params
    y = jnp.mean(x, axis=2)
    h1 = _silu(y @ w1 + b1)
    h2 = h1 @ w2 + b2
    bil = jnp.einsum("bi,bj,ijo->bo", h2, h2, wbil) + bbil
    a = _silu(jnp.concatenate([h2, bil], axis=-1))
    gate = jax.nn.sigmoid(a @ w3 + b3)
    return x * gate[:, :, None]


if __name__ == "__main__":
    B, L = 2, 1024
    inp, oup, reduction = 16, 8, 4          # oup == channel count C

    key = jax.random.PRNGKey(0)
    kx, kp = jax.random.split(key)
    x = jax.random.normal(kx, (B, oup, L), jnp.float32)

    kernel_params, ref_params = init_params(kp, inp, oup, reduction)
    ref = se_layer_ref(x, ref_params)

    # Fused single-pass path (auto-selected for this small shape) ...
    out_fused = jax.block_until_ready(se_layer(x, kernel_params))
    # ... and the two-pass reduce-then-apply path, forced to validate it too.
    out_two = jax.block_until_ready(se_layer(x, kernel_params, force_two_pass=True))

    for out in (out_fused, out_two):
        assert out.shape == x.shape
        assert jnp.allclose(out, ref, rtol=1e-4, atol=1e-5), "mismatch vs reference"

    print("KERNEL_OK")
</pallas_src>

<mosaic_0001>
module attributes {stable_mosaic.version = 11 : i64} {
  func.func @fused_se_kernel(%arg0: memref<2x8x1024xf32, #tpu.memory_space<vmem>>, %arg1: memref<8x4xf32, #tpu.memory_space<vmem>>, %arg2: memref<1x4xf32, #tpu.memory_space<vmem>>, %arg3: memref<4x4xf32, #tpu.memory_space<vmem>>, %arg4: memref<1x4xf32, #tpu.memory_space<vmem>>, %arg5: memref<4x8xf32, #tpu.memory_space<vmem>>, %arg6: memref<8x2xf32, #tpu.memory_space<vmem>>, %arg7: memref<1x2xf32, #tpu.memory_space<vmem>>, %arg8: memref<4x8xf32, #tpu.memory_space<vmem>>, %arg9: memref<2x8xf32, #tpu.memory_space<vmem>>, %arg10: memref<1x8xf32, #tpu.memory_space<vmem>>, %arg11: memref<2x8x1024xf32, #tpu.memory_space<vmem>>) attributes {dimension_semantics = [], scalar_prefetch = 0 : i64, scratch_operands = 0 : i64, tpu.core_type = #tpu.core_type<tc>} {
    %c0 = arith.constant 0 : index
    %c0_0 = arith.constant 0 : index
    %c0_1 = arith.constant 0 : index
    %0 = vector.load %arg0[%c0, %c0_0, %c0_1] : memref<2x8x1024xf32, #tpu.memory_space<vmem>>, vector<2x8x1024xf32>
    %cst = arith.constant dense<0.000000e+00> : vector<2x8xf32>
    %1 = vector.multi_reduction <add>, %0, %cst [2] : vector<2x8x1024xf32> to vector<2x8xf32>
    %cst_2 = arith.constant 9.765625E-4 : f32
    %2 = vector.broadcast %cst_2 : f32 to vector<2x8xf32>
    %3 = arith.mulf %1, %2 : vector<2x8xf32>
    %c0_3 = arith.constant 0 : index
    %c0_4 = arith.constant 0 : index
    %4 = vector.load %arg1[%c0_3, %c0_4] : memref<8x4xf32, #tpu.memory_space<vmem>>, vector<8x4xf32>
    %c0_5 = arith.constant 0 : index
    %c0_6 = arith.constant 0 : index
    %5 = vector.load %arg2[%c0_5, %c0_6] : memref<1x4xf32, #tpu.memory_space<vmem>>, vector<1x4xf32>
    %c0_7 = arith.constant 0 : index
    %c0_8 = arith.constant 0 : index
    %6 = vector.load %arg3[%c0_7, %c0_8] : memref<4x4xf32, #tpu.memory_space<vmem>>, vector<4x4xf32>
    %c0_9 = arith.constant 0 : index
    %c0_10 = arith.constant 0 : index
    %7 = vector.load %arg4[%c0_9, %c0_10] : memref<1x4xf32, #tpu.memory_space<vmem>>, vector<1x4xf32>
    %c0_11 = arith.constant 0 : index
    %c0_12 = arith.constant 0 : index
    %8 = vector.load %arg5[%c0_11, %c0_12] : memref<4x8xf32, #tpu.memory_space<vmem>>, vector<4x8xf32>
    %c0_13 = arith.constant 0 : index
    %c0_14 = arith.constant 0 : index
    %9 = vector.load %arg6[%c0_13, %c0_14] : memref<8x2xf32, #tpu.memory_space<vmem>>, vector<8x2xf32>
    %c0_15 = arith.constant 0 : index
    %c0_16 = arith.constant 0 : index
    %10 = vector.load %arg7[%c0_15, %c0_16] : memref<1x2xf32, #tpu.memory_space<vmem>>, vector<1x2xf32>
    %c0_17 = arith.constant 0 : index
    %c0_18 = arith.constant 0 : index
    %11 = vector.load %arg8[%c0_17, %c0_18] : memref<4x8xf32, #tpu.memory_space<vmem>>, vector<4x8xf32>
    %c0_19 = arith.constant 0 : index
    %c0_20 = arith.constant 0 : index
    %12 = vector.load %arg9[%c0_19, %c0_20] : memref<2x8xf32, #tpu.memory_space<vmem>>, vector<2x8xf32>
    %c0_21 = arith.constant 0 : index
    %c0_22 = arith.constant 0 : index
    %13 = vector.load %arg10[%c0_21, %c0_22] : memref<1x8xf32, #tpu.memory_space<vmem>>, vector<1x8xf32>
    %cst_23 = arith.constant dense<0.000000e+00> : vector<2x4xf32>
    %14 = tpu.matmul %3, %4, %cst_23 {dimension_numbers = #tpu.dot_dimension_numbers<[1], [0], [0], [1], [0, 0, 1, 1], [], []>} : vector<2x8xf32>, vector<8x4xf32>, vector<2x4xf32> -> vector<2x4xf32>
    %15 = vector.broadcast %5 : vector<1x4xf32> to vector<2x4xf32>
    %16 = arith.addf %14, %15 : vector<2x4xf32>
    %17 = arith.negf %16 : vector<2x4xf32>
    %18 = math.exp %17 : vector<2x4xf32>
    %cst_24 = arith.constant 1.000000e+00 : f32
    %19 = vector.broadcast %cst_24 : f32 to vector<2x4xf32>
    %20 = arith.addf %19, %18 : vector<2x4xf32>
    %21 = arith.divf %19, %20 : vector<2x4xf32>
    %22 = arith.mulf %16, %21 : vector<2x4xf32>
    %cst_25 = arith.constant dense<0.000000e+00> : vector<2x4xf32>
    %23 = tpu.matmul %22, %6, %cst_25 {dimension_numbers = #tpu.dot_dimension_numbers<[1], [0], [0], [1], [0, 0, 1, 1], [], []>} : vector<2x4xf32>, vector<4x4xf32>, vector<2x4xf32> -> vector<2x4xf32>
    %24 = vector.broadcast %7 : vector<1x4xf32> to vector<2x4xf32>
    %25 = arith.addf %23, %24 : vector<2x4xf32>
    %cst_26 = arith.constant dense<0.000000e+00> : vector<2x8xf32>
    %26 = tpu.matmul %25, %8, %cst_26 {dimension_numbers = #tpu.dot_dimension_numbers<[1], [0], [0], [1], [0, 0, 1, 1], [], []>} : vector<2x4xf32>, vector<4x8xf32>, vector<2x8xf32> -> vector<2x8xf32>
    %27 = tpu.concatenate %25, %25 in 1 : vector<2x4xf32>, vector<2x4xf32> -> vector<2x8xf32>
    %28 = arith.mulf %26, %27 : vector<2x8xf32>
    %cst_27 = arith.constant dense<0.000000e+00> : vector<2x2xf32>
    %29 = tpu.matmul %28, %9, %cst_27 {dimension_numbers = #tpu.dot_dimension_numbers<[1], [0], [0], [1], [0, 0, 1, 1], [], []>} : vector<2x8xf32>, vector<8x2xf32>, vector<2x2xf32> -> vector<2x2xf32>
    %30 = vector.broadcast %10 : vector<1x2xf32> to vector<2x2xf32>
    %31 = arith.addf %29, %30 : vector<2x2xf32>
    %32 = arith.negf %25 : vector<2x4xf32>
    %33 = math.exp %32 : vector<2x4xf32>
    %cst_28 = arith.constant 1.000000e+00 : f32
    %34 = vector.broadcast %cst_28 : f32 to vector<2x4xf32>
    %35 = arith.addf %34, %33 : vector<2x4xf32>
    %36 = arith.divf %34, %35 : vector<2x4xf32>
    %37 = arith.mulf %25, %36 : vector<2x4xf32>
    %cst_29 = arith.constant dense<0.000000e+00> : vector<2x8xf32>
    %38 = tpu.matmul %37, %11, %cst_29 {dimension_numbers = #tpu.dot_dimension_numbers<[1], [0], [0], [1], [0, 0, 1, 1], [], []>} : vector<2x4xf32>, vector<4x8xf32>, vector<2x8xf32> -> vector<2x8xf32>
    %39 = arith.negf %31 : vector<2x2xf32>
    %40 = math.exp %39 : vector<2x2xf32>
    %cst_30 = arith.constant 1.000000e+00 : f32
    %41 = vector.broadcast %cst_30 : f32 to vector<2x2xf32>
    %42 = arith.addf %41, %40 : vector<2x2xf32>
    %43 = arith.divf %41, %42 : vector<2x2xf32>
    %44 = arith.mulf %31, %43 : vector<2x2xf32>
    %cst_31 = arith.constant dense<0.000000e+00> : vector<2x8xf32>
    %45 = tpu.matmul %44, %12, %cst_31 {dimension_numbers = #tpu.dot_dimension_numbers<[1], [0], [0], [1], [0, 0, 1, 1], [], []>} : vector<2x2xf32>, vector<2x8xf32>, vector<2x8xf32> -> vector<2x8xf32>
    %46 = arith.addf %38, %45 : vector<2x8xf32>
    %47 = vector.broadcast %13 : vector<1x8xf32> to vector<2x8xf32>
    %48 = arith.addf %46, %47 : vector<2x8xf32>
    %49 = arith.negf %48 : vector<2x8xf32>
    %50 = math.exp %49 : vector<2x8xf32>
    %cst_32 = arith.constant 1.000000e+00 : f32
    %51 = vector.broadcast %cst_32 : f32 to vector<2x8xf32>
    %52 = arith.addf %51, %50 : vector<2x8xf32>
    %53 = arith.divf %51, %52 : vector<2x8xf32>
    %54 = vector.shape_cast %53 : vector<2x8xf32> to vector<2x8x1xf32>
    %55 = vector.broadcast %54 : vector<2x8x1xf32> to vector<2x8x1024xf32>
    %56 = arith.mulf %0, %55 : vector<2x8x1024xf32>
    %c0_33 = arith.constant 0 : index
    %c0_34 = arith.constant 0 : index
    %c0_35 = arith.constant 0 : index
    %57 = vector.load %arg11[%c0_33, %c0_34, %c0_35] : memref<2x8x1024xf32, #tpu.memory_space<vmem>>, vector<2x8x1024xf32>
    tpu.vector_store %arg11[%c0_33, %c0_34, %c0_35], %56 {strides = array<i32>} : memref<2x8x1024xf32, #tpu.memory_space<vmem>>, vector<2x8x1024xf32>,
    return
  }
}

</mosaic_0001>

<llo_original>
// kernel: tpu_custom_call.1
$region0: #{tpu_custom_call.1}
  #allocation0 [shape = 'u32[]', space=smem, size = 0x4, offset = 0x4, fixed_abs, tag = 'smem constant byte address 0x4 - core index']
  #allocation1 [shape = 'u32[144,128]{1,0:T(1,128)}', space=vmem, size = 0x12000, scoped, tag = 'internal scratch']
  %s0 = inlined_call_operand.hbm [shape: f32[2,8,1024], index: 0, kind: input, shape index: {}]
  %s1 = inlined_call_operand.vmem [shape: f32[8,4], index: 1, kind: input, shape index: {}]
  %s2 = inlined_call_operand.vmem [shape: f32[1,4], index: 2, kind: input, shape index: {}]
  %s3 = inlined_call_operand.vmem [shape: f32[4,4], index: 3, kind: input, shape index: {}]
  %s4 = inlined_call_operand.vmem [shape: f32[1,4], index: 4, kind: input, shape index: {}]
  %s5 = inlined_call_operand.vmem [shape: f32[4,8], index: 5, kind: input, shape index: {}]
  %s6 = inlined_call_operand.vmem [shape: f32[8,2], index: 6, kind: input, shape index: {}]
  %s7 = inlined_call_operand.vmem [shape: f32[1,2], index: 7, kind: input, shape index: {}]
  %s8 = inlined_call_operand.vmem [shape: f32[4,8], index: 8, kind: input, shape index: {}]
  %s9 = inlined_call_operand.vmem [shape: f32[2,8], index: 9, kind: input, shape index: {}]
  %s10 = inlined_call_operand.vmem [shape: f32[1,8], index: 10, kind: input, shape index: {}]
  %s11 = inlined_call_operand.hbm [shape: f32[2,8,1024], index: 11, kind: output, shape index: {}]
  %s12 = sld [smem:[#allocation0]]
  $region58: #{tpu_custom_call.1} parent=0
    _
  %s14 = ssub.s32 1, %s12
  %s15 = scalar_select 0, %s14, %s12
  $region1: #{tpu_custom_call.1} parent=0
    #allocation2 [shape = 'u8[65536]{0}', space=vmem, size = 0x10000, scoped, tag = 'input window, operand 0, single buffered']
    #allocation3 [shape = 's32[1]{0}', space=sflag, size = 0x4, scoped, tag = 'scoped memory for tpu_custom_call.1']
    #allocation4 [shape = 's32[1]{0}', space=sflag, size = 0x4, scoped, tag = 'scoped memory for tpu_custom_call.1']
    #allocation5 [shape = 'u8[65536]{0}', space=vmem, size = 0x10000, scoped, tag = 'output window, operand 0, single buffered']
    %16 = vsyncpa [#allocation3], 0
    %17 = vsyncpa [#allocation4], 0
    // Predicated region
    $region2: #{tpu_custom_call.1} parent=1 // pred_check
      _
    $region3: #{tpu_custom_call.1} parent=1 // pred_check_branch
      %19 = sbr.rel (0) target = $region5
    $region4: #{tpu_custom_call.1} parent=1 // pred_region
      %s21 = ssub.s32 2048, 2048
      %22 = vsyncadd [#allocation3], %s21
      %s23 = sshll.u32 [#allocation2], 4
      %s24 = int_to_ptr.vmem [resolvable:$true] %s23
      %29 = dma.hbm_to_vmem [thread:$0]  %s0, 2048, %s24, [#allocation3], 1024, 1024, 64
    $region5: #{tpu_custom_call.1} parent=1 // pred_fallthru
      _
    // Predicated region
    $region6: #{tpu_custom_call.1} parent=1 // pred_check
      _
    $region7: #{tpu_custom_call.1} parent=1 // pred_check_branch
      %31 = sbr.rel (0) target = $region9
    $region8: #{tpu_custom_call.1} parent=1 // pred_region
      _
    $region9: #{tpu_custom_call.1} parent=1 // pred_fallthru
      _
    // Predicated region
    $region10: #{tpu_custom_call.1} parent=1 // pred_check
      _
    $region11: #{tpu_custom_call.1} parent=1 // pred_check_branch
      %33 = sbr.rel (0) target = $region13
    $region12: #{tpu_custom_call.1} parent=1 // pred_region
      _
    $region13: #{tpu_custom_call.1} parent=1 // pred_fallthru
      _
    // Predicated region
    $region14: #{tpu_custom_call.1} parent=1 // pred_check
      _
    $region15: #{tpu_custom_call.1} parent=1 // pred_check_branch
      %35 = sbr.rel (0) target = $region17
    $region16: #{tpu_custom_call.1} parent=1 // pred_region
      _
    $region17: #{tpu_custom_call.1} parent=1 // pred_fallthru
      _
    // Predicated region
    $region18: #{tpu_custom_call.1} parent=1 // pred_check
      _
    $region19: #{tpu_custom_call.1} parent=1 // pred_check_branch
      %37 = sbr.rel (0) target = $region21
    $region20: #{tpu_custom_call.1} parent=1 // pred_region
      _
    $region21: #{tpu_custom_call.1} parent=1 // pred_fallthru
      _
    // Predicated region
    $region22: #{tpu_custom_call.1} parent=1 // pred_check
      _
    $region23: #{tpu_custom_call.1} parent=1 // pred_check_branch
      %39 = sbr.rel (0) target = $region25
    $region24: #{tpu_custom_call.1} parent=1 // pred_region
      _
    $region25: #{tpu_custom_call.1} parent=1 // pred_fallthru
      _
    // Predicated region
    $region26: #{tpu_custom_call.1} parent=1 // pred_check
      _
    $region27: #{tpu_custom_call.1} parent=1 // pred_check_branch
      %41 = sbr.rel (0) target = $region29
    $region28: #{tpu_custom_call.1} parent=1 // pred_region
      _
    $region29: #{tpu_custom_call.1} parent=1 // pred_fallthru
      _
    // Predicated region
    $region30: #{tpu_custom_call.1} parent=1 // pred_check
      _
    $region31: #{tpu_custom_call.1} parent=1 // pred_check_branch
      %43 = sbr.rel (0) target = $region33
    $region32: #{tpu_custom_call.1} parent=1 // pred_region
      _
    $region33: #{tpu_custom_call.1} parent=1 // pred_fallthru
      _
    // Predicated region
    $region34: #{tpu_custom_call.1} parent=1 // pred_check
      _
    $region35: #{tpu_custom_call.1} parent=1 // pred_check_branch
      %45 = sbr.rel (0) target = $region37
    $region36: #{tpu_custom_call.1} parent=1 // pred_region
      _
    $region37: #{tpu_custom_call.1} parent=1 // pred_fallthru
      _
    // Predicated region
    $region38: #{tpu_custom_call.1} parent=1 // pred_check
      _
    $region39: #{tpu_custom_call.1} parent=1 // pred_check_branch
      %47 = sbr.rel (0) target = $region41
    $region40: #{tpu_custom_call.1} parent=1 // pred_region
      _
    $region41: #{tpu_custom_call.1} parent=1 // pred_fallthru
      _
    // Predicated region
    $region42: #{tpu_custom_call.1} parent=1 // pred_check
      _
    $region43: #{tpu_custom_call.1} parent=1 // pred_check_branch
      %49 = sbr.rel (0) target = $region45
    $region44: #{tpu_custom_call.1} parent=1 // pred_region
      _
    $region45: #{tpu_custom_call.1} parent=1 // pred_fallthru
      _
    // Predicated region
    $region46: #{tpu_custom_call.1} parent=1 // pred_check
      _
    $region47: #{tpu_custom_call.1} parent=1 // pred_check_branch
      %51 = sbr.rel (0) target = $region49
    $region48: #{tpu_custom_call.1} parent=1 // pred_region
      %52 = dma.done [#allocation3], 2048
    $region49: #{tpu_custom_call.1} parent=1 // pred_fallthru
      _
    %v53 = vld [vmem:[#allocation2] sm:$0xff]
    %v54 = vld [vmem:[#allocation2 + $0x8] sm:$0xff]
    %v55 = vld [vmem:[#allocation2 + $0x10] sm:$0xff]
    %v56 = vld [vmem:[#allocation2 + $0x18] sm:$0xff]
    %v57 = vld [vmem:[#allocation2 + $0x20] sm:$0xff]
    %v58 = vld [vmem:[#allocation2 + $0x28] sm:$0xff]
    %v59 = vld [vmem:[#allocation2 + $0x30] sm:$0xff]
    %v60 = vld [vmem:[#allocation2 + $0x38] sm:$0xff]
    %v61 = vld [vmem:[#allocation2 + $0x40] sm:$0xff]
    %v62 = vld [vmem:[#allocation2 + $0x48] sm:$0xff]
    %v63 = vld [vmem:[#allocation2 + $0x50] sm:$0xff]
    %v64 = vld [vmem:[#allocation2 + $0x58] sm:$0xff]
    %v65 = vld [vmem:[#allocation2 + $0x60] sm:$0xff]
    %v66 = vld [vmem:[#allocation2 + $0x68] sm:$0xff]
    %v67 = vld [vmem:[#allocation2 + $0x70] sm:$0xff]
    %v68 = vld [vmem:[#allocation2 + $0x78] sm:$0xff]
    %v69 = vadd.f32 %v53, %v54
    %v70 = vadd.f32 %v69, %v55
    %v71 = vadd.f32 %v70, %v56
    %v72 = vadd.f32 %v71, %v57
    %v73 = vadd.f32 %v72, %v58
    %v74 = vadd.f32 %v73, %v59
    %v75 = vadd.f32 %v74, %v60
    %76 = vadd.xlane.f32.xlu0 %v75
    %v77 = vpop.xlane.xlu0 %76
    %v78 = vadd.f32 %v61, %v62
    %v79 = vadd.f32 %v78, %v63
    %v80 = vadd.f32 %v79, %v64
    %v81 = vadd.f32 %v80, %v65
    %v82 = vadd.f32 %v81, %v66
    %v83 = vadd.f32 %v82, %v67
    %v84 = vadd.f32 %v83, %v68
    %85 = vadd.xlane.f32.xlu0 %v84
    %v86 = vpop.xlane.xlu0 %85
    %v87 = vmul.f32 %v77, 0.0009765625
    %v88 = vmul.f32 %v86, 0.0009765625
    %v89 = vld [vmem:[%s1] sm:$0xff]
    %v90 = vld [vmem:[%s2] sm:$0x1]
    %v91 = vld [vmem:[%s3] sm:$0xf]
    %v92 = vld [vmem:[%s4] sm:$0x1]
    %v93 = vld [vmem:[%s5] sm:$0xf]
    %v94 = vld [vmem:[%s6] sm:$0xff]
    %v95 = vld [vmem:[%s7] sm:$0x1]
    %v96 = vld [vmem:[%s8] sm:$0xf]
    %v97 = vld [vmem:[%s9] sm:$0x3]
    %v98 = vld [vmem:[%s10] sm:$0x1]
    %v100 = vlaneseq
    %v101 = vshrl.u32 %v100, 7
    %v102 = vsub.s32 0, %v101
    %v103 = vrot.slane %v90, %v102
    %v107 = vlaneseq
    %v108 = vand.u32 %v107, 127
    %v109 = vlaneseq
    %v110 = vshrl.u32 %v109, 7
    %v111 = vsub.s32 %v108, %v110
    %v112 = vrot.slane %v87, %v111
    %v113 = vlaneseq
    %v114 = vshrl.u32 %v113, 7
    %v115 = vsub.s32 %v108, %v114
    %v116 = vrot.slane %v88, %v115
    %vm117 = vcmask 1041409
    %v118 = vsel %vm117, %v116, %v112
    %vm119 = vcmask 64512
    %v120 = vsel %vm119, %v118, 0
    %122 = vmatprep.subr.mxu0 0.0
    %123 = vmatpush1.msra.mxu0 %v89
    %124 = vmatprep.subr.mxu0 0.0
    %125 = vmatpush1.msra.mxu0 0.0
    %126 = vmatprep.subr.mxu0 0.0
    %127 = vmatpush1.msra.mxu0 0.0
    %128 = vmatprep.subr.mxu0 0.0
    %129 = vmatpush1.msra.mxu0 0.0
    %130 = vmatprep.subr.mxu0 0.0
    %131 = vmatpush1.msra.mxu0 0.0
    %132 = vmatprep.subr.mxu0 0.0
    %133 = vmatpush1.msra.mxu0 0.0
    %134 = vmatprep.subr.mxu0 0.0
    %135 = vmatpush1.msra.mxu0 0.0
    %136 = vmatprep.subr.mxu0 0.0
    %137 = vmatpush1.msra.mxu0 0.0
    %138 = vmatprep.subr.mxu0 0.0
    %139 = vmatpush1.msra.mxu0 0.0
    %140 = vmatprep.subr.mxu0 0.0
    %141 = vmatpush1.msra.mxu0 0.0
    %142 = vmatprep.subr.mxu0 0.0
    %143 = vmatpush1.msra.mxu0 0.0
    %144 = vmatprep.subr.mxu0 0.0
    %145 = vmatpush1.msra.mxu0 0.0
    %146 = vmatprep.subr.mxu0 0.0
    %147 = vmatpush1.msra.mxu0 0.0
    %148 = vmatprep.subr.mxu0 0.0
    %149 = vmatpush1.msra.mxu0 0.0
    %150 = vmatprep.subr.mxu0 0.0
    %151 = vmatpush1.msra.mxu0 0.0
    %152 = vmatprep.subr.mxu0 0.0
    %153 = vmatpush1.msra.mxu0 0.0
    %154 = vmatprep.subr.mxu0 0.0
    %155 = vmatpush1.msra.mxu0 0.0
    %156 = vmatprep.subr.mxu0 0.0
    %157 = vmatpush1.msra.mxu0 0.0
    %158 = vmatprep.subr.mxu0 0.0
    %159 = vmatpush1.msra.mxu0 0.0
    %160 = vmatprep.subr.mxu0 0.0
    %161 = vmatpush1.msra.mxu0 0.0
    %162 = vmatprep.subr.mxu0 0.0
    %163 = vmatpush1.msra.mxu0 0.0
    %164 = vmatprep.subr.mxu0 0.0
    %165 = vmatpush1.msra.mxu0 0.0
    %166 = vmatprep.subr.mxu0 0.0
    %167 = vmatpush1.msra.mxu0 0.0
    %168 = vmatprep.subr.mxu0 0.0
    %169 = vmatpush1.msra.mxu0 0.0
    %170 = vmatprep.subr.mxu0 0.0
    %171 = vmatpush1.msra.mxu0 0.0
    %172 = vmatprep.subr.mxu0 0.0
    %173 = vmatpush1.msra.mxu0 0.0
    %174 = vmatprep.subr.mxu0 0.0
    %175 = vmatpush1.msra.mxu0 0.0
    %176 = vmatprep.subr.mxu0 0.0
    %177 = vmatpush1.msra.mxu0 0.0
    %178 = vmatprep.subr.mxu0 0.0
    %179 = vmatpush1.msra.mxu0 0.0
    %180 = vmatprep.subr.mxu0 0.0
    %181 = vmatpush1.msra.mxu0 0.0
    %182 = vmatprep.subr.mxu0 0.0
    %183 = vmatpush1.msra.mxu0 0.0
    %184 = vmatprep.subr.mxu0 0.0
    %185 = vmatpush1.msra.mxu0 0.0
    %186 = vmatprep.mubr.f32.mxu0 0.0
    %187 = vmatmul.mubr.f32.gmra.mrb[0].mxu0 %v120
    %v188 = vpop.f32.mrb[0].mxu0
    %v189 = vadd.f32 %v103, %v188
    %v190 = vpop.f32.mrb[0].mxu0
    %191 = vdwg.mxu0
    %v192 = vxor.u32 %v189, 2147483648
    %v193 = vmul.f32 %v192, 1.442695
    %v194 = vpow.pop %v193
    %v195 = vadd.f32 %v194, 1.0
    %v196 = vrcp.pop %v195
    %v197 = vmul.f32 1.0, %v196
    %v198 = vmul.f32 %v189, %v197
    %v200 = vlaneseq
    %v201 = vshrl.u32 %v200, 7
    %v202 = vsub.s32 0, %v201
    %v203 = vrot.slane %v92, %v202
    %vm205 = vcmask 31744
    %v207 = vsel %vm205, %v198, 0
    %vm209 = vcmask 1043456
    %v211 = vsel %vm209, %v91, 0
    %213 = vmatprep.subr.mxu0 0.0
    %214 = vmatpush1.msra.mxu0 %v211
    %215 = vmatprep.subr.mxu0 0.0
    %216 = vmatpush1.msra.mxu0 0.0
    %217 = vmatprep.subr.mxu0 0.0
    %218 = vmatpush1.msra.mxu0 0.0
    %219 = vmatprep.subr.mxu0 0.0
    %220 = vmatpush1.msra.mxu0 0.0
    %221 = vmatprep.subr.mxu0 0.0
    %222 = vmatpush1.msra.mxu0 0.0
    %223 = vmatprep.subr.mxu0 0.0
    %224 = vmatpush1.msra.mxu0 0.0
    %225 = vmatprep.subr.mxu0 0.0
    %226 = vmatpush1.msra.mxu0 0.0
    %227 = vmatprep.subr.mxu0 0.0
    %228 = vmatpush1.msra.mxu0 0.0
    %229 = vmatprep.subr.mxu0 0.0
    %230 = vmatpush1.msra.mxu0 0.0
    %231 = vmatprep.subr.mxu0 0.0
    %232 = vmatpush1.msra.mxu0 0.0
    %233 = vmatprep.subr.mxu0 0.0
    %234 = vmatpush1.msra.mxu0 0.0
    %235 = vmatprep.subr.mxu0 0.0
    %236 = vmatpush1.msra.mxu0 0.0
    %237 = vmatprep.subr.mxu0 0.0
    %238 = vmatpush1.msra.mxu0 0.0
    %239 = vmatprep.subr.mxu0 0.0
    %240 = vmatpush1.msra.mxu0 0.0
    %241 = vmatprep.subr.mxu0 0.0
    %242 = vmatpush1.msra.mxu0 0.0
    %243 = vmatprep.subr.mxu0 0.0
    %244 = vmatpush1.msra.mxu0 0.0
    %245 = vmatprep.subr.mxu0 0.0
    %246 = vmatpush1.msra.mxu0 0.0
    %247 = vmatprep.subr.mxu0 0.0
    %248 = vmatpush1.msra.mxu0 0.0
    %249 = vmatprep.subr.mxu0 0.0
    %250 = vmatpush1.msra.mxu0 0.0
    %251 = vmatprep.subr.mxu0 0.0
    %252 = vmatpush1.msra.mxu0 0.0
    %253 = vmatprep.subr.mxu0 0.0
    %254 = vmatpush1.msra.mxu0 0.0
    %255 = vmatprep.subr.mxu0 0.0
    %256 = vmatpush1.msra.mxu0 0.0
    %257 = vmatprep.subr.mxu0 0.0
    %258 = vmatpush1.msra.mxu0 0.0
    %259 = vmatprep.subr.mxu0 0.0
    %260 = vmatpush1.msra.mxu0 0.0
    %261 = vmatprep.subr.mxu0 0.0
    %262 = vmatpush1.msra.mxu0 0.0
    %263 = vmatprep.subr.mxu0 0.0
    %264 = vmatpush1.msra.mxu0 0.0
    %265 = vmatprep.subr.mxu0 0.0
    %266 = vmatpush1.msra.mxu0 0.0
    %267 = vmatprep.subr.mxu0 0.0
    %268 = vmatpush1.msra.mxu0 0.0
    %269 = vmatprep.subr.mxu0 0.0
    %270 = vmatpush1.msra.mxu0 0.0
    %271 = vmatprep.subr.mxu0 0.0
    %272 = vmatpush1.msra.mxu0 0.0
    %273 = vmatprep.subr.mxu0 0.0
    %274 = vmatpush1.msra.mxu0 0.0
    %275 = vmatprep.subr.mxu0 0.0
    %276 = vmatpush1.msra.mxu0 0.0
    %277 = vmatprep.mubr.f32.mxu0 0.0
    %278 = vmatmul.mubr.f32.gmra.mrb[0].mxu0 %v207
    %v279 = vpop.f32.mrb[0].mxu0
    %v280 = vadd.f32 %v203, %v279
    %v281 = vpop.f32.mrb[0].mxu0
    %282 = vdwg.mxu0
    %v284 = vsel %vm205, %v280, 0
    %v287 = vsel %vm209, %v93, 0
    %289 = vmatprep.subr.mxu0 0.0
    %290 = vmatpush1.msra.mxu0 %v287
    %291 = vmatprep.subr.mxu0 0.0
    %292 = vmatpush1.msra.mxu0 0.0
    %293 = vmatprep.subr.mxu0 0.0
    %294 = vmatpush1.msra.mxu0 0.0
    %295 = vmatprep.subr.mxu0 0.0
    %296 = vmatpush1.msra.mxu0 0.0
    %297 = vmatprep.subr.mxu0 0.0
    %298 = vmatpush1.msra.mxu0 0.0
    %299 = vmatprep.subr.mxu0 0.0
    %300 = vmatpush1.msra.mxu0 0.0
    %301 = vmatprep.subr.mxu0 0.0
    %302 = vmatpush1.msra.mxu0 0.0
    %303 = vmatprep.subr.mxu0 0.0
    %304 = vmatpush1.msra.mxu0 0.0
    %305 = vmatprep.subr.mxu0 0.0
    %306 = vmatpush1.msra.mxu0 0.0
    %307 = vmatprep.subr.mxu0 0.0
    %308 = vmatpush1.msra.mxu0 0.0
    %309 = vmatprep.subr.mxu0 0.0
    %310 = vmatpush1.msra.mxu0 0.0
    %311 = vmatprep.subr.mxu0 0.0
    %312 = vmatpush1.msra.mxu0 0.0
    %313 = vmatprep.subr.mxu0 0.0
    %314 = vmatpush1.msra.mxu0 0.0
    %315 = vmatprep.subr.mxu0 0.0
    %316 = vmatpush1.msra.mxu0 0.0
    %317 = vmatprep.subr.mxu0 0.0
    %318 = vmatpush1.msra.mxu0 0.0
    %319 = vmatprep.subr.mxu0 0.0
    %320 = vmatpush1.msra.mxu0 0.0
    %321 = vmatprep.subr.mxu0 0.0
    %322 = vmatpush1.msra.mxu0 0.0
    %323 = vmatprep.subr.mxu0 0.0
    %324 = vmatpush1.msra.mxu0 0.0
    %325 = vmatprep.subr.mxu0 0.0
    %326 = vmatpush1.msra.mxu0 0.0
    %327 = vmatprep.subr.mxu0 0.0
    %328 = vmatpush1.msra.mxu0 0.0
    %329 = vmatprep.subr.mxu0 0.0
    %330 = vmatpush1.msra.mxu0 0.0
    %331 = vmatprep.subr.mxu0 0.0
    %332 = vmatpush1.msra.mxu0 0.0
    %333 = vmatprep.subr.mxu0 0.0
    %334 = vmatpush1.msra.mxu0 0.0
    %335 = vmatprep.subr.mxu0 0.0
    %336 = vmatpush1.msra.mxu0 0.0
    %337 = vmatprep.subr.mxu0 0.0
    %338 = vmatpush1.msra.mxu0 0.0
    %339 = vmatprep.subr.mxu0 0.0
    %340 = vmatpush1.msra.mxu0 0.0
    %341 = vmatprep.subr.mxu0 0.0
    %342 = vmatpush1.msra.mxu0 0.0
    %343 = vmatprep.subr.mxu0 0.0
    %344 = vmatpush1.msra.mxu0 0.0
    %345 = vmatprep.subr.mxu0 0.0
    %346 = vmatpush1.msra.mxu0 0.0
    %347 = vmatprep.subr.mxu0 0.0
    %348 = vmatpush1.msra.mxu0 0.0
    %349 = vmatprep.subr.mxu0 0.0
    %350 = vmatpush1.msra.mxu0 0.0
    %351 = vmatprep.subr.mxu0 0.0
    %352 = vmatpush1.msra.mxu0 0.0
    %353 = vmatprep.mubr.f32.mxu0 0.0
    %354 = vmatmul.mubr.f32.gmra.mrb[0].mxu0 %v284
    %v355 = vpop.f32.mrb[0].mxu0
    %v356 = vadd.f32 0.0, %v355
    %v357 = vpop.f32.mrb[0].mxu0
    %358 = vdwg.mxu0
    %359 = vrot.lane.b32.xlu0 %v280, 4
    %v360 = vpop.permute.xlu0 %359
    %v362 = vsel %vm205, %v280, %v360
    %v363 = vmul.f32 %v356, %v362
    %v365 = vlaneseq
    %v366 = vshrl.u32 %v365, 7
    %v367 = vsub.s32 0, %v366
    %v368 = vrot.slane %v95, %v367
    %v371 = vsel %vm119, %v363, 0
    %373 = vmatprep.subr.mxu0 0.0
    %374 = vmatpush1.msra.mxu0 %v94
    %375 = vmatprep.subr.mxu0 0.0
    %376 = vmatpush1.msra.mxu0 0.0
    %377 = vmatprep.subr.mxu0 0.0
    %378 = vmatpush1.msra.mxu0 0.0
    %379 = vmatprep.subr.mxu0 0.0
    %380 = vmatpush1.msra.mxu0 0.0
    %381 = vmatprep.subr.mxu0 0.0
    %382 = vmatpush1.msra.mxu0 0.0
    %383 = vmatprep.subr.mxu0 0.0
    %384 = vmatpush1.msra.mxu0 0.0
    %385 = vmatprep.subr.mxu0 0.0
    %386 = vmatpush1.msra.mxu0 0.0
    %387 = vmatprep.subr.mxu0 0.0
    %388 = vmatpush1.msra.mxu0 0.0
    %389 = vmatprep.subr.mxu0 0.0
    %390 = vmatpush1.msra.mxu0 0.0
    %391 = vmatprep.subr.mxu0 0.0
    %392 = vmatpush1.msra.mxu0 0.0
    %393 = vmatprep.subr.mxu0 0.0
    %394 = vmatpush1.msra.mxu0 0.0
    %395 = vmatprep.subr.mxu0 0.0
    %396 = vmatpush1.msra.mxu0 0.0
    %397 = vmatprep.subr.mxu0 0.0
    %398 = vmatpush1.msra.mxu0 0.0
    %399 = vmatprep.subr.mxu0 0.0
    %400 = vmatpush1.msra.mxu0 0.0
    %401 = vmatprep.subr.mxu0 0.0
    %402 = vmatpush1.msra.mxu0 0.0
    %403 = vmatprep.subr.mxu0 0.0
    %404 = vmatpush1.msra.mxu0 0.0
    %405 = vmatprep.subr.mxu0 0.0
    %406 = vmatpush1.msra.mxu0 0.0
    %407 = vmatprep.subr.mxu0 0.0
    %408 = vmatpush1.msra.mxu0 0.0
    %409 = vmatprep.subr.mxu0 0.0
    %410 = vmatpush1.msra.mxu0 0.0
    %411 = vmatprep.subr.mxu0 0.0
    %412 = vmatpush1.msra.mxu0 0.0
    %413 = vmatprep.subr.mxu0 0.0
    %414 = vmatpush1.msra.mxu0 0.0
    %415 = vmatprep.subr.mxu0 0.0
    %416 = vmatpush1.msra.mxu0 0.0
    %417 = vmatprep.subr.mxu0 0.0
    %418 = vmatpush1.msra.mxu0 0.0
    %419 = vmatprep.subr.mxu0 0.0
    %420 = vmatpush1.msra.mxu0 0.0
    %421 = vmatprep.subr.mxu0 0.0
    %422 = vmatpush1.msra.mxu0 0.0
    %423 = vmatprep.subr.mxu0 0.0
    %424 = vmatpush1.msra.mxu0 0.0
    %425 = vmatprep.subr.mxu0 0.0
    %426 = vmatpush1.msra.mxu0 0.0
    %427 = vmatprep.subr.mxu0 0.0
    %428 = vmatpush1.msra.mxu0 0.0
    %429 = vmatprep.subr.mxu0 0.0
    %430 = vmatpush1.msra.mxu0 0.0
    %431 = vmatprep.subr.mxu0 0.0
    %432 = vmatpush1.msra.mxu0 0.0
    %433 = vmatprep.subr.mxu0 0.0
    %434 = vmatpush1.msra.mxu0 0.0
    %435 = vmatprep.subr.mxu0 0.0
    %436 = vmatpush1.msra.mxu0 0.0
    %437 = vmatprep.mubr.f32.mxu0 0.0
    %438 = vmatmul.mubr.f32.gmra.mrb[0].mxu0 %v371
    %v439 = vpop.f32.mrb[0].mxu0
    %v440 = vadd.f32 %v368, %v439
    %v441 = vpop.f32.mrb[0].mxu0
    %442 = vdwg.mxu0
    %v443 = vxor.u32 %v280, 2147483648
    %v444 = vmul.f32 %v443, 1.442695
    %v445 = vpow.pop %v444
    %v446 = vadd.f32 %v445, 1.0
    %v447 = vrcp.pop %v446
    %v448 = vmul.f32 1.0, %v447
    %v449 = vmul.f32 %v280, %v448
    %v450 = vxor.u32 %v440, 2147483648
    %v451 = vmul.f32 %v450, 1.442695
    %v452 = vpow.pop %v451
    %v453 = vadd.f32 %v452, 1.0
    %v454 = vrcp.pop %v453
    %v455 = vmul.f32 1.0, %v454
    %v456 = vmul.f32 %v440, %v455
    %vm457 = vcmask 15360
    %v459 = vsel %vm457, %v456, 0
    %vm461 = vcmask 1041408
    %v463 = vsel %vm461, %v97, 0
    %465 = vmatprep.subr.mxu0 0.0
    %466 = vmatpush1.msra.mxu0 %v463
    %467 = vmatprep.subr.mxu0 0.0
    %468 = vmatpush1.msra.mxu0 0.0
    %469 = vmatprep.subr.mxu0 0.0
    %470 = vmatpush1.msra.mxu0 0.0
    %471 = vmatprep.subr.mxu0 0.0
    %472 = vmatpush1.msra.mxu0 0.0
    %473 = vmatprep.subr.mxu0 0.0
    %474 = vmatpush1.msra.mxu0 0.0
    %475 = vmatprep.subr.mxu0 0.0
    %476 = vmatpush1.msra.mxu0 0.0
    %477 = vmatprep.subr.mxu0 0.0
    %478 = vmatpush1.msra.mxu0 0.0
    %479 = vmatprep.subr.mxu0 0.0
    %480 = vmatpush1.msra.mxu0 0.0
    %481 = vmatprep.subr.mxu0 0.0
    %482 = vmatpush1.msra.mxu0 0.0
    %483 = vmatprep.subr.mxu0 0.0
    %484 = vmatpush1.msra.mxu0 0.0
    %485 = vmatprep.subr.mxu0 0.0
    %486 = vmatpush1.msra.mxu0 0.0
    %487 = vmatprep.subr.mxu0 0.0
    %488 = vmatpush1.msra.mxu0 0.0
    %489 = vmatprep.subr.mxu0 0.0
    %490 = vmatpush1.msra.mxu0 0.0
    %491 = vmatprep.subr.mxu0 0.0
    %492 = vmatpush1.msra.mxu0 0.0
    %493 = vmatprep.subr.mxu0 0.0
    %494 = vmatpush1.msra.mxu0 0.0
    %495 = vmatprep.subr.mxu0 0.0
    %496 = vmatpush1.msra.mxu0 0.0
    %497 = vmatprep.subr.mxu0 0.0
    %498 = vmatpush1.msra.mxu0 0.0
    %499 = vmatprep.subr.mxu0 0.0
    %500 = vmatpush1.msra.mxu0 0.0
    %501 = vmatprep.subr.mxu0 0.0
    %502 = vmatpush1.msra.mxu0 0.0
    %503 = vmatprep.subr.mxu0 0.0
    %504 = vmatpush1.msra.mxu0 0.0
    %505 = vmatprep.subr.mxu0 0.0
    %506 = vmatpush1.msra.mxu0 0.0
    %507 = vmatprep.subr.mxu0 0.0
    %508 = vmatpush1.msra.mxu0 0.0
    %509 = vmatprep.subr.mxu0 0.0
    %510 = vmatpush1.msra.mxu0 0.0
    %511 = vmatprep.subr.mxu0 0.0
    %512 = vmatpush1.msra.mxu0 0.0
    %513 = vmatprep.subr.mxu0 0.0
    %514 = vmatpush1.msra.mxu0 0.0
    %515 = vmatprep.subr.mxu0 0.0
    %516 = vmatpush1.msra.mxu0 0.0
    %517 = vmatprep.subr.mxu0 0.0
    %518 = vmatpush1.msra.mxu0 0.0
    %519 = vmatprep.subr.mxu0 0.0
    %520 = vmatpush1.msra.mxu0 0.0
    %521 = vmatprep.subr.mxu0 0.0
    %522 = vmatpush1.msra.mxu0 0.0
    %523 = vmatprep.subr.mxu0 0.0
    %524 = vmatpush1.msra.mxu0 0.0
    %525 = vmatprep.subr.mxu0 0.0
    %526 = vmatpush1.msra.mxu0 0.0
    %527 = vmatprep.subr.mxu0 0.0
    %528 = vmatpush1.msra.mxu0 0.0
    %529 = vmatprep.mubr.f32.mxu0 0.0
    %530 = vmatmul.mubr.f32.gmra.mrb[0].mxu0 %v459
    %v531 = vpop.f32.mrb[0].mxu0
    %v532 = vadd.f32 0.0, %v531
    %v533 = vpop.f32.mrb[0].mxu0
    %534 = vdwg.mxu0
    %v536 = vsel %vm205, %v449, 0
    %v539 = vsel %vm209, %v96, 0
    %541 = vmatprep.subr.mxu0 0.0
    %542 = vmatpush1.msra.mxu0 %v539
    %543 = vmatprep.subr.mxu0 0.0
    %544 = vmatpush1.msra.mxu0 0.0
    %545 = vmatprep.subr.mxu0 0.0
    %546 = vmatpush1.msra.mxu0 0.0
    %547 = vmatprep.subr.mxu0 0.0
    %548 = vmatpush1.msra.mxu0 0.0
    %549 = vmatprep.subr.mxu0 0.0
    %550 = vmatpush1.msra.mxu0 0.0
    %551 = vmatprep.subr.mxu0 0.0
    %552 = vmatpush1.msra.mxu0 0.0
    %553 = vmatprep.subr.mxu0 0.0
    %554 = vmatpush1.msra.mxu0 0.0
    %555 = vmatprep.subr.mxu0 0.0
    %556 = vmatpush1.msra.mxu0 0.0
    %557 = vmatprep.subr.mxu0 0.0
    %558 = vmatpush1.msra.mxu0 0.0
    %559 = vmatprep.subr.mxu0 0.0
    %560 = vmatpush1.msra.mxu0 0.0
    %561 = vmatprep.subr.mxu0 0.0
    %562 = vmatpush1.msra.mxu0 0.0
    %563 = vmatprep.subr.mxu0 0.0
    %564 = vmatpush1.msra.mxu0 0.0
    %565 = vmatprep.subr.mxu0 0.0
    %566 = vmatpush1.msra.mxu0 0.0
    %567 = vmatprep.subr.mxu0 0.0
    %568 = vmatpush1.msra.mxu0 0.0
    %569 = vmatprep.subr.mxu0 0.0
    %570 = vmatpush1.msra.mxu0 0.0
    %571 = vmatprep.subr.mxu0 0.0
    %572 = vmatpush1.msra.mxu0 0.0
    %573 = vmatprep.subr.mxu0 0.0
    %574 = vmatpush1.msra.mxu0 0.0
    %575 = vmatprep.subr.mxu0 0.0
    %576 = vmatpush1.msra.mxu0 0.0
    %577 = vmatprep.subr.mxu0 0.0
    %578 = vmatpush1.msra.mxu0 0.0
    %579 = vmatprep.subr.mxu0 0.0
    %580 = vmatpush1.msra.mxu0 0.0
    %581 = vmatprep.subr.mxu0 0.0
    %582 = vmatpush1.msra.mxu0 0.0
    %583 = vmatprep.subr.mxu0 0.0
    %584 = vmatpush1.msra.mxu0 0.0
    %585 = vmatprep.subr.mxu0 0.0
    %586 = vmatpush1.msra.mxu0 0.0
    %587 = vmatprep.subr.mxu0 0.0
    %588 = vmatpush1.msra.mxu0 0.0
    %589 = vmatprep.subr.mxu0 0.0
    %590 = vmatpush1.msra.mxu0 0.0
    %591 = vmatprep.subr.mxu0 0.0
    %592 = vmatpush1.msra.mxu0 0.0
    %593 = vmatprep.subr.mxu0 0.0
    %594 = vmatpush1.msra.mxu0 0.0
    %595 = vmatprep.subr.mxu0 0.0
    %596 = vmatpush1.msra.mxu0 0.0
    %597 = vmatprep.subr.mxu0 0.0
    %598 = vmatpush1.msra.mxu0 0.0
    %599 = vmatprep.subr.mxu0 0.0
    %600 = vmatpush1.msra.mxu0 0.0
    %601 = vmatprep.subr.mxu0 0.0
    %602 = vmatpush1.msra.mxu0 0.0
    %603 = vmatprep.subr.mxu0 0.0
    %604 = vmatpush1.msra.mxu0 0.0
    %605 = vmatprep.mubr.f32.mxu0 0.0
    %606 = vmatmul.mubr.f32.gmra.mrb[0].mxu0 %v536
    %v607 = vpop.f32.mrb[0].mxu0
    %v608 = vadd.f32 %v532, %v607
    %v609 = vpop.f32.mrb[0].mxu0
    %610 = vdwg.mxu0
    %v612 = vlaneseq
    %v613 = vshrl.u32 %v612, 7
    %v614 = vsub.s32 0, %v613
    %v615 = vrot.slane %v98, %v614
    %v617 = vadd.f32 %v608, %v615
    %v618 = vxor.u32 %v617, 2147483648
    %v619 = vmul.f32 %v618, 1.442695
    %v620 = vpow.pop %v619
    %v621 = vadd.f32 %v620, 1.0
    %v622 = vrcp.pop %v621
    %v623 = vmul.f32 1.0, %v622
    %v624 = vlaneseq
    %v625 = vshrl.u32 %v624, 7
    %v626 = vsub.s32 0, %v625
    %v627 = vrot.slane %v623, %v626
    %629 = vbcast.lane.b32.xlu0 %v627, 256
    %v630 = vpop.permute.xlu0 %629
    %v631 = vlaneseq
    %v632 = vshrl.u32 %v631, 7
    %v633 = vsub.s32 1, %v632
    %v634 = vrot.slane %v623, %v633
    %636 = vbcast.lane.b32.xlu0 %v634, 256
    %v637 = vpop.permute.xlu0 %636
    %v638 = vmul.f32 %v53, %v630
    %v639 = vmul.f32 %v54, %v630
    %v640 = vmul.f32 %v55, %v630
    %v641 = vmul.f32 %v56, %v630
    %v642 = vmul.f32 %v57, %v630
    %v643 = vmul.f32 %v58, %v630
    %v644 = vmul.f32 %v59, %v630
    %v645 = vmul.f32 %v60, %v630
    %v646 = vmul.f32 %v61, %v637
    %v647 = vmul.f32 %v62, %v637
    %v648 = vmul.f32 %v63, %v637
    %v649 = vmul.f32 %v64, %v637
    %v650 = vmul.f32 %v65, %v637
    %v651 = vmul.f32 %v66, %v637
    %v652 = vmul.f32 %v67, %v637
    %v653 = vmul.f32 %v68, %v637
    %654 = vst [vmem:[#allocation5] sm:$0xff] %v638
    %655 = vst [vmem:[#allocation5 + $0x8] sm:$0xff] %v639
    %656 = vst [vmem:[#allocation5 + $0x10] sm:$0xff] %v640
    %657 = vst [vmem:[#allocation5 + $0x18] sm:$0xff] %v641
    %658 = vst [vmem:[#allocation5 + $0x20] sm:$0xff] %v642
    %659 = vst [vmem:[#allocation5 + $0x28] sm:$0xff] %v643
    %660 = vst [vmem:[#allocation5 + $0x30] sm:$0xff] %v644
    %661 = vst [vmem:[#allocation5 + $0x38] sm:$0xff] %v645
    %662 = vst [vmem:[#allocation5 + $0x40] sm:$0xff] %v646
    %663 = vst [vmem:[#allocation5 + $0x48] sm:$0xff] %v647
    %664 = vst [vmem:[#allocation5 + $0x50] sm:$0xff] %v648
    %665 = vst [vmem:[#allocation5 + $0x58] sm:$0xff] %v649
    %666 = vst [vmem:[#allocation5 + $0x60] sm:$0xff] %v650
    %667 = vst [vmem:[#allocation5 + $0x68] sm:$0xff] %v651
    %668 = vst [vmem:[#allocation5 + $0x70] sm:$0xff] %v652
    %669 = vst [vmem:[#allocation5 + $0x78] sm:$0xff] %v653
    // Predicated region
    $region50: #{tpu_custom_call.1} parent=1 // pred_check
      _
    $region51: #{tpu_custom_call.1} parent=1 // pred_check_branch
      %671 = sbr.rel (0) target = $region53
    $region52: #{tpu_custom_call.1} parent=1 // pred_region
      %s673 = ssub.s32 2048, 2048
      %674 = vsyncadd [#allocation4], %s673
      %s675 = sshll.u32 [#allocation5], 4
      %s676 = int_to_ptr.vmem [resolvable:$true] %s675
      %681 = dma.vmem_to_hbm [thread:$0]  %s676, 2048, %s11, [#allocation4], 1024, 1024, 64
    $region53: #{tpu_custom_call.1} parent=1 // pred_fallthru
      _
    // Predicated region
    $region54: #{tpu_custom_call.1} parent=1 // pred_check
      _
    $region55: #{tpu_custom_call.1} parent=1 // pred_check_branch
      %683 = sbr.rel (0) target = $region57
    $region56: #{tpu_custom_call.1} parent=1 // pred_region
      %684 = dma.done [#allocation4], 2048
    $region57: #{tpu_custom_call.1} parent=1 // pred_fallthru
      _
    %685 = vsyncpa [#allocation3], 1
    %686 = vsyncpa [#allocation4], 1

</llo_original>
